<compile_context>
chip_gen: v7x
topology: tpu7x:2x2x1
jax: 0.10.0
libtpu: 0.0.40
codegen_flags: <defaults>
</compile_context>

<pallas_src>
import functools

import jax
import jax.numpy as jnp
from jax import lax
from jax.experimental import pallas as pl
from jax.experimental.pallas import tpu as pltpu

IGNORE_INDEX = 0
_LANE = 128
_SUBLANE = 8
# Per-tile VMEM budget for the log-prob block (Pallas double-buffers it).
# Conservative enough for v7x's 64 MiB VMEM; vmem_limit_bytes is raised so
# v6e/v5e can also use large tiles.
_TILE_BYTES_BUDGET = 8 * 1024 * 1024


def _nll_partial_kernel(logp_ref, tgt_ref, out_ref, *, n_rows, tile_n, ignore_index):
    # logp_ref: (tile_n, C)  log-probs, native dtype (bf16/f32) -> upcast in-kernel
    # tgt_ref : (tile_n, 1)  int32 target class ids
    # out_ref : (1, 8, 128)  per-tile partial loss (already negated), broadcast
    logp = logp_ref[...].astype(jnp.float32)
    tgt = tgt_ref[...]
    t_n, c = logp.shape

    col_ids = lax.broadcasted_iota(jnp.int32, (t_n, c), 1)        # lane index
    row_ids = lax.broadcasted_iota(jnp.int32, (t_n, 1), 0)        # sublane index
    global_row = pl.program_id(0) * tile_n + row_ids              # (tile_n, 1)

    # Fused validity mask: ignore_index rows AND padded rows of the last tile.
    valid = (tgt != ignore_index) & (global_row < n_rows)         # (tile_n, 1)
    mask = (col_ids == tgt) & valid                               # (tile_n, C)

    # Exactly one lane per valid row is selected -> single whole-tile reduce.
    tile_sum = jnp.sum(jnp.where(mask, logp, jnp.zeros_like(logp)))
    out_ref[...] = jnp.full(out_ref.shape, -tile_sum, dtype=out_ref.dtype)


def _choose_tile_n(n, c, itemsize):
    """Largest multiple of 8 rows whose (tile, C) block fits the VMEM budget."""
    row_bytes = max(c * itemsize, 1)
    max_rows = max(_TILE_BYTES_BUDGET // row_bytes, 1)
    tile = min(n, max_rows)
    if n >= _SUBLANE:
        tile = max((tile // _SUBLANE) * _SUBLANE, _SUBLANE)
    else:
        tile = n  # tiny N: block covers the full array dim
    return tile


def command_loss(log_probs: jax.Array, target: jax.Array,
                 ignore_index: int = IGNORE_INDEX) -> jax.Array:
    """NLLLoss(reduction='sum', ignore_index=0) on (N, C) log-probs, (N,) targets."""
    assert log_probs.ndim == 2 and target.ndim == 1
    n, c = log_probs.shape
    # Do NOT upcast log_probs here: stream native dtype, upcast in-kernel.
    tgt = target.astype(jnp.int32).reshape(n, 1)

    tile_n = _choose_tile_n(n, c, log_probs.dtype.itemsize)
    num_tiles = pl.cdiv(n, tile_n)

    kernel = functools.partial(
        _nll_partial_kernel, n_rows=n, tile_n=tile_n, ignore_index=ignore_index)

    partials = pl.pallas_call(
        kernel,
        out_shape=jax.ShapeDtypeStruct((num_tiles, _SUBLANE, _LANE), jnp.float32),
        grid_spec=pl.GridSpec(
            grid=(num_tiles,),
            in_specs=[
                pl.BlockSpec((tile_n, c), lambda i: (i, 0)),
                pl.BlockSpec((tile_n, 1), lambda i: (i, 0)),
            ],
            out_specs=pl.BlockSpec((1, _SUBLANE, _LANE), lambda i: (i, 0, 0)),
        ),
        compiler_params=pltpu.CompilerParams(
            # Independent per-tile partial sums -> safe to shard across v7x's 2 TCs.
            dimension_semantics=("parallel",),
            # Allow big double-buffered tiles on v6e/v5e without exceeding v7x VMEM.
            vmem_limit_bytes=48 * 1024 * 1024,
        ),
    )(log_probs, tgt)

    # Tiny final reduction over the per-tile partials (already negated in-kernel).
    return jnp.sum(partials[:, 0, 0])


def _reference(log_probs, target, ignore_index=IGNORE_INDEX):
    # Pure-JAX reference of torch.nn.NLLLoss(reduction='sum', ignore_index=0)
    picked = jnp.take_along_axis(log_probs, target[:, None], axis=1)[:, 0]
    valid = target != ignore_index
    return -jnp.sum(jnp.where(valid, picked, 0.0))


if __name__ == "__main__":
    key = jax.random.PRNGKey(0)
    k1, k2, k3, k4 = jax.random.split(key, 4)

    # Main check: batch=2, seq=8 flattened -> N=16 tokens, vocab C=32, f32.
    N, C = 16, 32
    logits = jax.random.normal(k1, (N, C), dtype=jnp.float32)
    log_probs = jax.nn.log_softmax(logits, axis=-1)        # NLLLoss expects log-probs
    target = jax.random.randint(k2, (N,), 0, C, dtype=jnp.int32)  # some 0s -> ignored

    loss = jax.block_until_ready(command_loss(log_probs, target))
    ref = _reference(log_probs, target)
    assert jnp.allclose(loss, ref, rtol=1e-5, atol=1e-5), (loss, ref)

    # Second check: bf16 input, N not a multiple of the tile (exercises the
    # native-dtype path, multi-tile grid, and padded-row masking).
    N2, C2 = 44, 128
    logits2 = jax.random.normal(k3, (N2, C2), dtype=jnp.float32)
    log_probs2 = jax.nn.log_softmax(logits2, axis=-1).astype(jnp.bfloat16)
    target2 = jax.random.randint(k4, (N2,), 0, C2, dtype=jnp.int32)

    loss2 = jax.block_until_ready(command_loss(log_probs2, target2))
    ref2 = _reference(log_probs2.astype(jnp.float32), target2)
    assert jnp.allclose(loss2, ref2, rtol=1e-3, atol=1e-2), (loss2, ref2)

    print("KERNEL_OK")
</pallas_src>

<mosaic_0001>
module attributes {stable_mosaic.version = 11 : i64} {
  func.func @_nll_partial_kernel(%arg0: i32, %arg1: memref<16x32xf32, #tpu.memory_space<vmem>>, %arg2: memref<16x1xi32, #tpu.memory_space<vmem>>, %arg3: memref<1x8x128xf32, #tpu.memory_space<vmem>>) attributes {dimension_semantics = [#tpu.dimension_semantics<parallel>], iteration_bounds = array<i64: 1>, scalar_prefetch = 0 : i64, scratch_operands = 0 : i64, tpu.core_type = #tpu.core_type<tc>, window_params = [{transform_indices = @transform_0, window_bounds = array<i64: 16, 32>}, {transform_indices = @transform_1, window_bounds = array<i64: 16, 1>}, {transform_indices = @transform_2, window_bounds = array<i64: 1, 8, 128>}]} {
    %c0 = arith.constant 0 : index
    %c0_0 = arith.constant 0 : index
    %0 = vector.load %arg1[%c0, %c0_0] : memref<16x32xf32, #tpu.memory_space<vmem>>, vector<16x32xf32>
    %c0_1 = arith.constant 0 : index
    %c0_2 = arith.constant 0 : index
    %1 = vector.load %arg2[%c0_1, %c0_2] : memref<16x1xi32, #tpu.memory_space<vmem>>, vector<16x1xi32>
    %2 = tpu.iota {dimensions = array<i32: 1>} : vector<16x32xi32>
    %3 = tpu.iota {dimensions = array<i32: 0>} : vector<16x1xi32>
    %c16_i32 = arith.constant 16 : i32
    %4 = arith.muli %arg0, %c16_i32 : i32
    %5 = vector.broadcast %4 : i32 to vector<16x1xi32>
    %6 = arith.addi %5, %3 : vector<16x1xi32>
    %c0_i32 = arith.constant 0 : i32
    %7 = vector.broadcast %c0_i32 : i32 to vector<16x1xi32>
    %8 = arith.cmpi ne, %1, %7 : vector<16x1xi32>
    %c16_i32_3 = arith.constant 16 : i32
    %9 = vector.broadcast %c16_i32_3 : i32 to vector<16x1xi32>
    %10 = arith.cmpi slt, %6, %9 : vector<16x1xi32>
    %11 = arith.andi %8, %10 : vector<16x1xi1>
    %12 = vector.broadcast %1 : vector<16x1xi32> to vector<16x32xi32>
    %13 = arith.cmpi eq, %2, %12 : vector<16x32xi32>
    %14 = vector.broadcast %11 : vector<16x1xi1> to vector<16x32xi1>
    %15 = arith.andi %13, %14 : vector<16x32xi1>
    %cst = arith.constant 0.000000e+00 : f32
    %16 = vector.broadcast %cst : f32 to vector<16x32xf32>
    %17 = arith.select %15, %0, %16 : vector<16x32xi1>, vector<16x32xf32>
    %18 = vector.shape_cast %17 : vector<16x32xf32> to vector<1x16x32xf32>
    %cst_4 = arith.constant dense<0.000000e+00> : vector<1xf32>
    %19 = vector.multi_reduction <add>, %18, %cst_4 [1, 2] : vector<1x16x32xf32> to vector<1xf32>
    %20 = vector.shape_cast %19 : vector<1xf32> to vector<1x1x1xf32>
    %21 = vector.extract %20[0, 0, 0] : f32 from vector<1x1x1xf32>
    %cst_5 = arith.constant 0.000000e+00 : f32
    %22 = arith.subf %cst_5, %21 : f32
    %23 = vector.broadcast %22 : f32 to vector<1x8x128xf32>
    %c0_6 = arith.constant 0 : index
    %c0_7 = arith.constant 0 : index
    %c0_8 = arith.constant 0 : index
    %24 = vector.load %arg3[%c0_6, %c0_7, %c0_8] : memref<1x8x128xf32, #tpu.memory_space<vmem>>, vector<1x8x128xf32>
    tpu.vector_store %arg3[%c0_6, %c0_7, %c0_8], %23 {strides = array<i32>} : memref<1x8x128xf32, #tpu.memory_space<vmem>>, vector<1x8x128xf32>,
    return
  }
  func.func @transform_0(%arg0: i32) -> (i32, i32) {
    %c0_i32 = arith.constant 0 : i32
    %c0_i32_0 = arith.constant 0 : i32
    return %arg0, %c0_i32 : i32, i32
  }
  func.func @transform_1(%arg0: i32) -> (i32, i32) {
    %c0_i32 = arith.constant 0 : i32
    %c0_i32_0 = arith.constant 0 : i32
    return %arg0, %c0_i32 : i32, i32
  }
  func.func @transform_2(%arg0: i32) -> (i32, i32, i32) {
    %c0_i32 = arith.constant 0 : i32
    %c0_i32_0 = arith.constant 0 : i32
    %c0_i32_1 = arith.constant 0 : i32
    return %arg0, %c0_i32, %c0_i32_0 : i32, i32, i32
  }
}

</mosaic_0001>

<llo_original>
// kernel: tpu_custom_call.1
$region0: #{tpu_custom_call.1}
  #allocation0 [shape = 'u32[]', space=smem, size = 0x4, offset = 0x4, fixed_abs, tag = 'smem constant byte address 0x4 - core index']
  #allocation1 [shape = 'u32[144,128]{1,0:T(1,128)}', space=vmem, size = 0x12000, scoped, tag = 'internal scratch']
  %s0 = inlined_call_operand.vmem [shape: f32[16,32], index: 0, kind: input, shape index: {}]
  %s1 = inlined_call_operand.vmem [shape: s32[16,1], index: 1, kind: input, shape index: {}]
  %s2 = inlined_call_operand.hbm [shape: f32[1,8,128], index: 2, kind: output, shape index: {}]
  %s3 = sld [smem:[#allocation0]]
  $region18: #{tpu_custom_call.1} parent=0
    _
  %s5 = ssub.s32 1, %s3
  %s6 = scalar_select 0, %s5, %s3
  $region1: #{tpu_custom_call.1} parent=0
    #allocation2 [shape = 'u8[4096]{0}', space=vmem, size = 0x1000, scoped, tag = 'output window, operand 0, single buffered']
    #allocation3 [shape = 's32[1]{0}', space=sflag, size = 0x4, scoped, tag = 'scoped memory for tpu_custom_call.1']
    %7 = vsyncpa [#allocation3], 0
    // Predicated region
    $region2: #{tpu_custom_call.1} parent=1 // pred_check
      _
    $region3: #{tpu_custom_call.1} parent=1 // pred_check_branch
      %9 = sbr.rel (0) target = $region5
    $region4: #{tpu_custom_call.1} parent=1 // pred_region
      _
    $region5: #{tpu_custom_call.1} parent=1 // pred_fallthru
      _
    // Predicated region
    $region6: #{tpu_custom_call.1} parent=1 // pred_check
      _
    $region7: #{tpu_custom_call.1} parent=1 // pred_check_branch
      %11 = sbr.rel (0) target = $region9
    $region8: #{tpu_custom_call.1} parent=1 // pred_region
      _
    $region9: #{tpu_custom_call.1} parent=1 // pred_fallthru
      _
    %v12 = vld [vmem:[%s0] sm:$0xff]
    %v13 = vld [vmem:[%s0 + $0x8] sm:$0xff]
    %v14 = vld [vmem:[%s1] sm:$0xff]
    %v15 = vld [vmem:[%s1 + $0x8] sm:$0xff]
    %v16 = vlaneseq
    %v17 = vand.u32 %v16, 127
    %v18 = vlaneseq
    %v19 = vshrl.u32 %v18, 7
    %v20 = vadd.s32 %v19, 8
    %s21 = smul.u32 0, 16
    %v22 = vstv %s21
    %v23 = vadd.s32 %v22, %v19
    %v24 = vadd.s32 %v22, %v20
    %vm25 = vcmp.ne.s32.totalorder %v14, 0
    %vm26 = vcmp.ne.s32.totalorder %v15, 0
    %vm27 = vcmp.lt.s32.totalorder %v23, 16
    %vm28 = vcmp.lt.s32.totalorder %v24, 16
    %vm29 = vmand %vm25, %vm27
    %vm30 = vmand %vm26, %vm28
    %31 = vset.pattern.permute.xlu0 0
    %32 = vperm.xlu0 %31, %v14
    %v33 = vpop.permute.xlu0 %32
    %34 = vset.pattern.permute.xlu0 0
    %35 = vperm.xlu0 %34, %v15
    %v36 = vpop.permute.xlu0 %35
    %vm37 = vcmp.eq.s32.totalorder %v17, %v33
    %vm38 = vcmp.eq.s32.totalorder %v17, %v36
    %v39 = vsel %vm29, 1, 0
    %v40 = vsel %vm30, 1, 0
    %41 = vset.pattern.permute.xlu0 0
    %42 = vperm.xlu0 %41, %v39
    %v43 = vpop.permute.xlu0 %42
    %44 = vset.pattern.permute.xlu0 0
    %45 = vperm.xlu0 %44, %v40
    %v46 = vpop.permute.xlu0 %45
    %vm47 = vcmp.eq.s32.totalorder %v43, 1
    %vm48 = vcmp.eq.s32.totalorder %v46, 1
    %vm49 = vmand %vm37, %vm47
    %vm50 = vmand %vm38, %vm48
    %v51 = vsel %vm49, %v12, 0.0
    %v52 = vsel %vm50, %v13, 0.0
    %vm53 = vcmask 261120
    %v54 = vsel %vm53, %v51, 0.0
    %v55 = vsel %vm53, %v52, 0.0
    %v56 = vadd.f32 %v54, %v55
    %57 = vadd.xlane.f32.xlu0 %v56
    %v58 = vpop.xlane.xlu0 %57
    %v59 = vrot.slane %v58, 4
    %v60 = vadd.f32 %v58, %v59
    %v61 = vrot.slane %v60, 2
    %v62 = vadd.f32 %v60, %v61
    %v63 = vrot.slane %v62, 1
    %v64 = vadd.f32 %v62, %v63
    %s65 = vtos %v64
    %s66 = ssub.f32 0.0, %s65
    %v67 = vstv %s66
    %68 = vst [vmem:[#allocation2] sm:$0xff] %v67
    // Predicated region
    $region10: #{tpu_custom_call.1} parent=1 // pred_check
      _
    $region11: #{tpu_custom_call.1} parent=1 // pred_check_branch
      %70 = sbr.rel (0) target = $region13
    $region12: #{tpu_custom_call.1} parent=1 // pred_region
      %s72 = ssub.s32 128, 128
      %73 = vsyncadd [#allocation3], %s72
      %s75 = sshll.u32 [#allocation2], 4
      %s76 = int_to_ptr.vmem [resolvable:$true] %s75
      %78 = dma.vmem_to_hbm [thread:$0]  %s76, 128, %s2, [#allocation3]
    $region13: #{tpu_custom_call.1} parent=1 // pred_fallthru
      _
    // Predicated region
    $region14: #{tpu_custom_call.1} parent=1 // pred_check
      _
    $region15: #{tpu_custom_call.1} parent=1 // pred_check_branch
      %80 = sbr.rel (0) target = $region17
    $region16: #{tpu_custom_call.1} parent=1 // pred_region
      %81 = dma.done [#allocation3], 128
    $region17: #{tpu_custom_call.1} parent=1 // pred_fallthru
      _
    %82 = vsyncpa [#allocation3], 1

</llo_original>
